<compile_context>
chip_gen: v7x
topology: tpu7x:2x2x1
jax: 0.10.0
libtpu: 0.0.40
codegen_flags: <defaults>
</compile_context>

<pallas_src>
import functools

import jax
import jax.numpy as jnp
from jax import lax
from jax.experimental import pallas as pl
from jax.experimental.pallas import tpu as pltpu


# Tile caps (second-to-last block dims; multiples of 8).  f32 score tile = tn*tm*4B
# = 2 MiB, well inside v7x's 32 MiB default scoped VMEM with double-buffered inputs.
_INFONCE_TN = 512
_INFONCE_TM = 1024
_PAIR_TN = 1024


def _pick_tile(dim, cap):
    # Block dims must either equal the full dim or be a multiple of 8 (caps are).
    return dim if dim <= cap else cap


# ----------------------------------------------------------------------------
# Contrastive criterion: fused, tiled InfoNCE (FixedCosineInfoNCE, fixed temperature)
# ----------------------------------------------------------------------------
def _fused_infonce_kernel(inv_temp_ref, ref_ref, pos_ref, neg_ref, out_ref,
                          m_scr, l_scr, *, n_ref, n_neg, tn, tm):
    k = pl.program_id(0)
    ni = pl.program_id(1)
    mi = pl.program_id(2)

    @pl.when(mi == 0)
    def _init():
        m_scr[...] = jnp.full((tn, 1), -jnp.inf, dtype=jnp.float32)
        l_scr[...] = jnp.zeros((tn, 1), dtype=jnp.float32)

    inv_t = inv_temp_ref[k]            # per-criterion 1/temperature from SMEM

    ref_blk = ref_ref[0]               # (tn, D), native dtype -> MXU
    neg_blk = neg_ref[0]               # (tm, D), native dtype -> MXU

    # (tn, tm) similarity: contract over features directly (no neg.T relayout).
    scores = lax.dot_general(
        ref_blk, neg_blk,
        dimension_numbers=(((1,), (1,)), ((), ())),
        preferred_element_type=jnp.float32,
    ) * inv_t

    # Mask padded negative columns of edge tiles.
    col = lax.broadcasted_iota(jnp.int32, (tn, tm), 1) + mi * tm
    scores = jnp.where(col < n_neg, scores, -jnp.inf)

    # Online max / log-sum-exp over the M (negatives) axis.
    m_prev = m_scr[...]
    m_new = jnp.maximum(m_prev, jnp.max(scores, axis=-1, keepdims=True))
    alpha = jnp.exp(m_prev - m_new)
    l_scr[...] = alpha * l_scr[...] + jnp.sum(jnp.exp(scores - m_new),
                                              axis=-1, keepdims=True)
    m_scr[...] = m_new

    @pl.when(mi == pl.num_programs(2) - 1)
    def _finalize_n_tile():
        # Elementwise / EUP path explicitly in f32 (v5e has no bf16 VPU/EUP).
        ref_f32 = ref_blk.astype(jnp.float32)
        pos_f32 = pos_ref[0].astype(jnp.float32)
        pos_dist = jnp.sum(ref_f32 * pos_f32, axis=-1, keepdims=True) * inv_t

        row = lax.broadcasted_iota(jnp.int32, (tn, 1), 0) + ni * tn
        valid = row < n_ref
        # align_row = -(pos_dist - c) with c = max_m neg_dist = m_scr
        align_rows = jnp.where(valid, m_scr[...] - pos_dist, 0.0)
        unif_rows = jnp.where(valid, jnp.log(l_scr[...]), 0.0)
        a_part = jnp.sum(align_rows)
        u_part = jnp.sum(unif_rows)

        @pl.when(ni == 0)
        def _zero():
            out_ref[k, 0] = jnp.float32(0.0)
            out_ref[k, 1] = jnp.float32(0.0)
            out_ref[k, 2] = jnp.float32(0.0)

        out_ref[k, 1] = out_ref[k, 1] + a_part
        out_ref[k, 2] = out_ref[k, 2] + u_part

        @pl.when(ni == pl.num_programs(1) - 1)
        def _mean():
            inv_n = jnp.float32(1.0 / n_ref)
            align = out_ref[k, 1] * inv_n
            uniform = out_ref[k, 2] * inv_n
            out_ref[k, 0] = align + uniform
            out_ref[k, 1] = align
            out_ref[k, 2] = uniform


def fused_infonce(reference, positive, negative, inv_temps, *,
                  block_n=_INFONCE_TN, block_m=_INFONCE_TM):
    """InfoNCE for K stacked criteria in a single pallas_call.

    reference, positive: (K, N, D); negative: (K, M, D); inv_temps: (K,) f32.
    Returns (K, 3) f32 with columns (loss, align, uniform).
    """
    k, n, d = reference.shape
    kn, m, dn = negative.shape
    assert positive.shape == reference.shape and kn == k and dn == d
    tn = _pick_tile(n, block_n)
    tm = _pick_tile(m, block_m)
    grid = (k, pl.cdiv(n, tn), pl.cdiv(m, tm))
    kernel = functools.partial(_fused_infonce_kernel,
                               n_ref=n, n_neg=m, tn=tn, tm=tm)
    return pl.pallas_call(
        kernel,
        grid_spec=pltpu.PrefetchScalarGridSpec(
            num_scalar_prefetch=1,
            grid=grid,
            in_specs=[
                pl.BlockSpec((1, tn, d), lambda k_, ni, mi, temps: (k_, ni, 0)),
                pl.BlockSpec((1, tn, d), lambda k_, ni, mi, temps: (k_, ni, 0)),
                pl.BlockSpec((1, tm, d), lambda k_, ni, mi, temps: (k_, mi, 0)),
            ],
            out_specs=pl.BlockSpec(memory_space=pltpu.MemorySpace.SMEM),
            scratch_shapes=[
                pltpu.VMEM((tn, 1), jnp.float32),   # running row max
                pltpu.VMEM((tn, 1), jnp.float32),   # running row sum-exp
            ],
        ),
        out_shape=jax.ShapeDtypeStruct((k, 3), jnp.float32),
        # Scalar outputs accumulate across the N and M axes -> all axes "arbitrary".
        # TODO(synk): emit per-(k, n-tile) partial sums instead to mark the N axis
        # "parallel" and get the v7x megacore split.
        compiler_params=pltpu.CompilerParams(
            dimension_semantics=("arbitrary", "arbitrary", "arbitrary")),
    )(inv_temps, reference, positive, negative)


# ----------------------------------------------------------------------------
# Supervised criteria: fused, tiled nn.MSELoss / nn.L1Loss (mean reduction)
# ----------------------------------------------------------------------------
def _fused_pair_kernel(kind_ref, ref_ref, pos_ref, out_ref, *, n, d, tn):
    k = pl.program_id(0)
    ni = pl.program_id(1)

    diff = ref_ref[0].astype(jnp.float32) - pos_ref[0].astype(jnp.float32)
    is_l1 = kind_ref[k] == 1
    vals = jnp.where(is_l1, jnp.abs(diff), diff * diff)

    row = lax.broadcasted_iota(jnp.int32, (tn, d), 0) + ni * tn
    vals = jnp.where(row < n, vals, 0.0)
    part = jnp.sum(vals)

    @pl.when(ni == 0)
    def _zero():
        out_ref[k] = jnp.float32(0.0)

    out_ref[k] = out_ref[k] + part

    @pl.when(ni == pl.num_programs(1) - 1)
    def _mean():
        out_ref[k] = out_ref[k] * jnp.float32(1.0 / (n * d))


def fused_pair_loss(reference, positive, kinds, *, block_n=_PAIR_TN):
    """Mean MSE (kind 0) / L1 (kind 1) for K stacked criteria. Returns (K,) f32."""
    k, n, d = reference.shape
    assert positive.shape == reference.shape
    tn = _pick_tile(n, block_n)
    grid = (k, pl.cdiv(n, tn))
    kernel = functools.partial(_fused_pair_kernel, n=n, d=d, tn=tn)
    return pl.pallas_call(
        kernel,
        grid_spec=pltpu.PrefetchScalarGridSpec(
            num_scalar_prefetch=1,
            grid=grid,
            in_specs=[
                pl.BlockSpec((1, tn, d), lambda k_, ni, kinds_: (k_, ni, 0)),
                pl.BlockSpec((1, tn, d), lambda k_, ni, kinds_: (k_, ni, 0)),
            ],
            out_specs=pl.BlockSpec(memory_space=pltpu.MemorySpace.SMEM),
        ),
        out_shape=jax.ShapeDtypeStruct((k,), jnp.float32),
        compiler_params=pltpu.CompilerParams(
            dimension_semantics=("arbitrary", "arbitrary")),
    )(kinds, reference, positive)


# ----------------------------------------------------------------------------
# MultiCriterions: glue mirroring the PyTorch module
# ----------------------------------------------------------------------------
class Batch:
    def __init__(self, reference, positive, negative=None):
        self.reference = reference
        self.positive = positive
        self.negative = negative


def _uniform_shapes(predictions, with_negative):
    refs = {tuple(p.reference.shape) for p in predictions}
    poss = {tuple(p.positive.shape) for p in predictions}
    ok = len(refs) == 1 and len(poss) == 1
    if with_negative:
        negs = {tuple(p.negative.shape) for p in predictions}
        ok = ok and len(negs) == 1
    return ok


class MultiCriterions:
    """JAX/Pallas port of cebra.models.multicriterions.MultiCriterions."""

    def __init__(self, losses, mode):
        self.specs = []   # ("infonce", temperature) | ("mse", None) | ("l1", None)
        self.slices = []
        for loss_info in losses:
            slice_indices = loss_info["indices"]
            if mode == "supervised":
                loss = loss_info["supervised_loss"]
            elif mode == "contrastive":
                loss = loss_info["contrastive_loss"]
            else:
                raise NotImplementedError
            name = loss["name"]
            kwargs = loss.get("kwargs", {})
            if name == "InfoNCE":
                spec = ("infonce", float(kwargs.get("temperature", 1.0)))
            elif name in ("nn.MSELoss", "MSELoss"):
                spec = ("mse", None)
            elif name in ("nn.L1Loss", "L1Loss"):
                spec = ("l1", None)
            else:
                # TODO(synk): only InfoNCE / nn.MSELoss / nn.L1Loss criteria are translated.
                raise ValueError(f"Loss {name} not found.")
            self.specs.append(spec)
            self.slices.append(slice(*slice_indices))
            assert len(self.specs) == len(self.slices)

    def __call__(self, predictions):
        predictions = list(predictions)
        assert len(self.specs) == len(predictions)
        num = len(predictions)

        all_contrastive = (all(p.negative is not None for p in predictions)
                           and all(s[0] == "infonce" for s in self.specs))
        all_supervised = (all(p.negative is None for p in predictions)
                          and all(s[0] in ("mse", "l1") for s in self.specs))

        if all_contrastive and _uniform_shapes(predictions, with_negative=True):
            # Single fused pallas_call over all K criteria.
            ref = jnp.stack([p.reference for p in predictions])
            pos = jnp.stack([p.positive for p in predictions])
            neg = jnp.stack([p.negative for p in predictions])
            inv_t = jnp.asarray([1.0 / s[1] for s in self.specs], dtype=jnp.float32)
            out = fused_infonce(ref, pos, neg, inv_t)            # (K, 3)
            losses = [out[i, 0] for i in range(num)]
        elif all_supervised and _uniform_shapes(predictions, with_negative=False):
            ref = jnp.stack([p.reference for p in predictions])
            pos = jnp.stack([p.positive for p in predictions])
            kinds = jnp.asarray([0 if s[0] == "mse" else 1 for s in self.specs],
                                dtype=jnp.int32)
            out = fused_pair_loss(ref, pos, kinds)               # (K,)
            losses = [out[i] for i in range(num)]
        else:
            # Shapes or criterion kinds differ: fall back to one call per
            # prediction (K=1 instances of the same fused kernels).
            losses = []
            for spec, p in zip(self.specs, predictions):
                if p.negative is None:
                    if spec[0] not in ("mse", "l1"):
                        raise ValueError(
                            f"Criterion {spec[0]} requires a negative batch.")
                    kinds = jnp.asarray([0 if spec[0] == "mse" else 1], jnp.int32)
                    out = fused_pair_loss(p.reference[None], p.positive[None], kinds)
                    losses.append(out[0])
                else:
                    if spec[0] != "infonce":
                        raise ValueError(
                            f"Criterion {spec[0]} does not take a negative batch.")
                    inv_t = jnp.asarray([1.0 / spec[1]], jnp.float32)
                    out = fused_infonce(p.reference[None], p.positive[None],
                                        p.negative[None], inv_t)
                    losses.append(out[0, 0])
        assert len(self.specs) == len(predictions) == len(losses)
        return losses


# ----------------------------------------------------------------------------
# Pure-JAX references (for correctness checking only)
# ----------------------------------------------------------------------------
def _infonce_ref(ref, pos, neg, temperature):
    pos_dist = jnp.sum(ref * pos, axis=-1) / temperature
    neg_dist = ref @ neg.T / temperature
    c = jnp.max(neg_dist, axis=-1)
    align = jnp.mean(-(pos_dist - c))
    uniform = jnp.mean(jax.scipy.special.logsumexp(neg_dist - c[:, None], axis=-1))
    return align + uniform


if __name__ == "__main__":
    loss_configs = [
        {
            "indices": (0, 10),
            "contrastive_loss": {"name": "InfoNCE", "kwargs": {"temperature": 1.0}},
            "supervised_loss": {"name": "nn.MSELoss", "kwargs": {}},
        },
        {
            "indices": (10, 20),
            "contrastive_loss": {"name": "InfoNCE", "kwargs": {"temperature": 0.5}},
            "supervised_loss": {"name": "nn.L1Loss", "kwargs": {}},
        },
    ]

    key = jax.random.PRNGKey(0)
    keys = jax.random.split(key, 7)
    n, d = 32, 10
    ref1 = jax.random.normal(keys[0], (n, d), jnp.float32)
    pos1 = jax.random.normal(keys[1], (n, d), jnp.float32)
    neg1 = jax.random.normal(keys[2], (n, d), jnp.float32)
    ref2 = jax.random.normal(keys[3], (n, d), jnp.float32)
    pos2 = jax.random.normal(keys[4], (n, d), jnp.float32)
    neg2 = jax.random.normal(keys[5], (n, d), jnp.float32)

    # --- contrastive mode: ONE fused pallas_call for both InfoNCE criteria ---
    predictions = (
        Batch(reference=ref1, positive=pos1, negative=neg1),
        Batch(reference=ref2, positive=pos2, negative=neg2),
    )
    multi_loss = MultiCriterions(loss_configs, mode="contrastive")
    contrastive_losses = multi_loss(predictions)
    contrastive_losses = [jax.block_until_ready(l) for l in contrastive_losses]
    assert len(contrastive_losses) == 2

    ref_vals = [
        _infonce_ref(ref1, pos1, neg1, 1.0),
        _infonce_ref(ref2, pos2, neg2, 0.5),
    ]
    for got, want in zip(contrastive_losses, ref_vals):
        assert jnp.allclose(got, want, rtol=1e-5, atol=1e-5), (got, want)

    # --- supervised mode: ONE fused pallas_call (MSE + L1, negative is None) ---
    sup_predictions = (
        Batch(reference=ref1, positive=pos1, negative=None),
        Batch(reference=ref2, positive=pos2, negative=None),
    )
    multi_loss_sup = MultiCriterions(loss_configs, mode="supervised")
    sup_losses = multi_loss_sup(sup_predictions)
    sup_losses = [jax.block_until_ready(l) for l in sup_losses]
    assert jnp.allclose(sup_losses[0], jnp.mean((ref1 - pos1) ** 2), rtol=1e-5)
    assert jnp.allclose(sup_losses[1], jnp.mean(jnp.abs(ref2 - pos2)), rtol=1e-5)

    # --- tiled path: multiple N / M tiles exercise the online log-sum-exp ---
    out_tiled = fused_infonce(
        jnp.stack([ref1, ref2]), jnp.stack([pos1, pos2]), jnp.stack([neg1, neg2]),
        jnp.asarray([1.0, 2.0], jnp.float32), block_n=16, block_m=16)
    out_tiled = jax.block_until_ready(out_tiled)
    for i, (r, p, g, t) in enumerate([(ref1, pos1, neg1, 1.0),
                                      (ref2, pos2, neg2, 0.5)]):
        assert jnp.allclose(out_tiled[i, 0], _infonce_ref(r, p, g, t),
                            rtol=1e-5, atol=1e-5)

    # --- fallback path: per-prediction calls when negative batch shapes differ ---
    neg2b = jax.random.normal(keys[6], (48, d), jnp.float32)
    mixed_predictions = (
        Batch(reference=ref1, positive=pos1, negative=neg1),
        Batch(reference=ref2, positive=pos2, negative=neg2b),
    )
    mixed_losses = multi_loss(mixed_predictions)
    mixed_losses = [jax.block_until_ready(l) for l in mixed_losses]
    assert jnp.allclose(mixed_losses[0], _infonce_ref(ref1, pos1, neg1, 1.0),
                        rtol=1e-5, atol=1e-5)
    assert jnp.allclose(mixed_losses[1], _infonce_ref(ref2, pos2, neg2b, 0.5),
                        rtol=1e-5, atol=1e-5)

    print("KERNEL_OK")
</pallas_src>

<mosaic_0001>
module attributes {stable_mosaic.version = 11 : i64} {
  func.func @_fused_infonce_kernel(%arg0: i32, %arg1: i32, %arg2: i32, %arg3: memref<2xf32, #tpu.memory_space<smem>>, %arg4: memref<1x32x10xf32, #tpu.memory_space<vmem>>, %arg5: memref<1x32x10xf32, #tpu.memory_space<vmem>>, %arg6: memref<1x32x10xf32, #tpu.memory_space<vmem>>, %arg7: memref<2x3xf32, #tpu.memory_space<smem>>, %arg8: memref<32x1xf32, #tpu.memory_space<vmem>>, %arg9: memref<32x1xf32, #tpu.memory_space<vmem>>) attributes {dimension_semantics = [#tpu.dimension_semantics<arbitrary>, #tpu.dimension_semantics<arbitrary>, #tpu.dimension_semantics<arbitrary>], iteration_bounds = array<i64: 2, 1, 1>, scalar_prefetch = 1 : i64, scratch_operands = 2 : i64, tpu.core_type = #tpu.core_type<tc>, window_params = [{transform_indices = @transform_0, window_bounds = array<i64: 1, 32, 10>}, {transform_indices = @transform_1, window_bounds = array<i64: 1, 32, 10>}, {transform_indices = @transform_2, window_bounds = array<i64: 1, 32, 10>}, {transform_indices = @transform_3, window_bounds = array<i64: 2, 3>}]} {
    %c0_i32 = arith.constant 0 : i32
    %0 = arith.cmpi eq, %arg2, %c0_i32 : i32
    %1 = arith.extui %0 : i1 to i32
    %c0_i32_0 = arith.constant 0 : i32
    %2 = arith.cmpi ne, %1, %c0_i32_0 : i32
    scf.if %2 {
      %cst_20 = arith.constant 0xFF800000 : f32
      %39 = vector.broadcast %cst_20 : f32 to vector<32x1xf32>
      %c0_21 = arith.constant 0 : index
      %c0_22 = arith.constant 0 : index
      %40 = vector.load %arg8[%c0_21, %c0_22] : memref<32x1xf32, #tpu.memory_space<vmem>>, vector<32x1xf32>
      tpu.vector_store %arg8[%c0_21, %c0_22], %39 {strides = array<i32>} : memref<32x1xf32, #tpu.memory_space<vmem>>, vector<32x1xf32>,
      %cst_23 = arith.constant 0.000000e+00 : f32
      %41 = vector.broadcast %cst_23 : f32 to vector<32x1xf32>
      %c0_24 = arith.constant 0 : index
      %c0_25 = arith.constant 0 : index
      %42 = vector.load %arg9[%c0_24, %c0_25] : memref<32x1xf32, #tpu.memory_space<vmem>>, vector<32x1xf32>
      tpu.vector_store %arg9[%c0_24, %c0_25], %41 {strides = array<i32>} : memref<32x1xf32, #tpu.memory_space<vmem>>, vector<32x1xf32>,
    } else {
    }
    %3 = arith.index_cast %arg0 : i32 to index
    %4 = memref.load %arg3[%3] : memref<2xf32, #tpu.memory_space<smem>>
    %c0 = arith.constant 0 : index
    %c0_1 = arith.constant 0 : index
    %c0_2 = arith.constant 0 : index
    %5 = vector.load %arg4[%c0, %c0_1, %c0_2] : memref<1x32x10xf32, #tpu.memory_space<vmem>>, vector<1x32x10xf32>
    %6 = vector.shape_cast %5 : vector<1x32x10xf32> to vector<32x10xf32>
    %c0_3 = arith.constant 0 : index
    %c0_4 = arith.constant 0 : index
    %c0_5 = arith.constant 0 : index
    %7 = vector.load %arg6[%c0_3, %c0_4, %c0_5] : memref<1x32x10xf32, #tpu.memory_space<vmem>>, vector<1x32x10xf32>
    %8 = vector.shape_cast %7 : vector<1x32x10xf32> to vector<32x10xf32>
    %cst = arith.constant dense<0.000000e+00> : vector<32x32xf32>
    %9 = tpu.matmul %6, %8, %cst {dimension_numbers = #tpu.dot_dimension_numbers<[1], [1], [0], [0], [0, 0, 1, 0], [], []>} : vector<32x10xf32>, vector<32x10xf32>, vector<32x32xf32> -> vector<32x32xf32>
    %10 = vector.broadcast %4 : f32 to vector<32x32xf32>
    %11 = arith.mulf %9, %10 : vector<32x32xf32>
    %12 = tpu.iota {dimensions = array<i32: 1>} : vector<32x32xi32>
    %c32_i32 = arith.constant 32 : i32
    %13 = arith.muli %arg2, %c32_i32 : i32
    %14 = vector.broadcast %13 : i32 to vector<32x32xi32>
    %15 = arith.addi %12, %14 : vector<32x32xi32>
    %c32_i32_6 = arith.constant 32 : i32
    %16 = vector.broadcast %c32_i32_6 : i32 to vector<32x32xi32>
    %17 = arith.cmpi slt, %15, %16 : vector<32x32xi32>
    %cst_7 = arith.constant 0xFF800000 : f32
    %18 = vector.broadcast %cst_7 : f32 to vector<32x32xf32>
    %19 = arith.select %17, %11, %18 : vector<32x32xi1>, vector<32x32xf32>
    %c0_8 = arith.constant 0 : index
    %c0_9 = arith.constant 0 : index
    %20 = vector.load %arg8[%c0_8, %c0_9] : memref<32x1xf32, #tpu.memory_space<vmem>>, vector<32x1xf32>
    %cst_10 = arith.constant dense<0xFF800000> : vector<32xf32>
    %21 = vector.multi_reduction <maximumf>, %19, %cst_10 [1] : vector<32x32xf32> to vector<32xf32>
    %22 = vector.shape_cast %21 : vector<32xf32> to vector<32x1xf32>
    %23 = arith.maximumf %20, %22 : vector<32x1xf32>
    %24 = arith.subf %20, %23 : vector<32x1xf32>
    %25 = math.exp %24 : vector<32x1xf32>
    %c0_11 = arith.constant 0 : index
    %c0_12 = arith.constant 0 : index
    %26 = vector.load %arg9[%c0_11, %c0_12] : memref<32x1xf32, #tpu.memory_space<vmem>>, vector<32x1xf32>
    %27 = arith.mulf %25, %26 : vector<32x1xf32>
    %28 = vector.broadcast %23 : vector<32x1xf32> to vector<32x32xf32>
    %29 = arith.subf %19, %28 : vector<32x32xf32>
    %30 = math.exp %29 : vector<32x32xf32>
    %cst_13 = arith.constant dense<0.000000e+00> : vector<32xf32>
    %31 = vector.multi_reduction <add>, %30, %cst_13 [1] : vector<32x32xf32> to vector<32xf32>
    %32 = vector.shape_cast %31 : vector<32xf32> to vector<32x1xf32>
    %33 = arith.addf %27, %32 : vector<32x1xf32>
    %c0_14 = arith.constant 0 : index
    %c0_15 = arith.constant 0 : index
    %34 = vector.load %arg9[%c0_14, %c0_15] : memref<32x1xf32, #tpu.memory_space<vmem>>, vector<32x1xf32>
    tpu.vector_store %arg9[%c0_14, %c0_15], %33 {strides = array<i32>} : memref<32x1xf32, #tpu.memory_space<vmem>>, vector<32x1xf32>,
    %c0_16 = arith.constant 0 : index
    %c0_17 = arith.constant 0 : index
    %35 = vector.load %arg8[%c0_16, %c0_17] : memref<32x1xf32, #tpu.memory_space<vmem>>, vector<32x1xf32>
    tpu.vector_store %arg8[%c0_16, %c0_17], %23 {strides = array<i32>} : memref<32x1xf32, #tpu.memory_space<vmem>>, vector<32x1xf32>,
    %c0_i32_18 = arith.constant 0 : i32
    %36 = arith.cmpi eq, %arg2, %c0_i32_18 : i32
    %37 = arith.extui %36 : i1 to i32
    %c0_i32_19 = arith.constant 0 : i32
    %38 = arith.cmpi ne, %37, %c0_i32_19 : i32
    scf.if %38 {
      %c0_20 = arith.constant 0 : index
      %c0_21 = arith.constant 0 : index
      %c0_22 = arith.constant 0 : index
      %39 = vector.load %arg5[%c0_20, %c0_21, %c0_22] : memref<1x32x10xf32, #tpu.memory_space<vmem>>, vector<1x32x10xf32>
      %40 = vector.shape_cast %39 : vector<1x32x10xf32> to vector<32x10xf32>
      %41 = arith.mulf %6, %40 : vector<32x10xf32>
      %cst_23 = arith.constant dense<0.000000e+00> : vector<32xf32>
      %42 = vector.multi_reduction <add>, %41, %cst_23 [1] : vector<32x10xf32> to vector<32xf32>
      %43 = vector.shape_cast %42 : vector<32xf32> to vector<32x1xf32>
      %44 = vector.broadcast %4 : f32 to vector<32x1xf32>
      %45 = arith.mulf %43, %44 : vector<32x1xf32>
      %46 = tpu.iota {dimensions = array<i32: 0>} : vector<32x1xi32>
      %c32_i32_24 = arith.constant 32 : i32
      %47 = arith.muli %arg1, %c32_i32_24 : i32
      %48 = vector.broadcast %47 : i32 to vector<32x1xi32>
      %49 = arith.addi %46, %48 : vector<32x1xi32>
      %c32_i32_25 = arith.constant 32 : i32
      %50 = vector.broadcast %c32_i32_25 : i32 to vector<32x1xi32>
      %51 = arith.cmpi slt, %49, %50 : vector<32x1xi32>
      %c0_26 = arith.constant 0 : index
      %c0_27 = arith.constant 0 : index
      %52 = vector.load %arg8[%c0_26, %c0_27] : memref<32x1xf32, #tpu.memory_space<vmem>>, vector<32x1xf32>
      %53 = arith.subf %52, %45 : vector<32x1xf32>
      %cst_28 = arith.constant 0.000000e+00 : f32
      %54 = vector.broadcast %cst_28 : f32 to vector<32x1xf32>
      %55 = arith.select %51, %53, %54 : vector<32x1xi1>, vector<32x1xf32>
      %c0_29 = arith.constant 0 : index
      %c0_30 = arith.constant 0 : index
      %56 = vector.load %arg9[%c0_29, %c0_30] : memref<32x1xf32, #tpu.memory_space<vmem>>, vector<32x1xf32>
      %57 = math.log %56 : vector<32x1xf32>
      %cst_31 = arith.constant 0.000000e+00 : f32
      %58 = vector.broadcast %cst_31 : f32 to vector<32x1xf32>
      %59 = arith.select %51, %57, %58 : vector<32x1xi1>, vector<32x1xf32>
      %60 = vector.shape_cast %55 : vector<32x1xf32> to vector<1x32x1xf32>
      %cst_32 = arith.constant dense<0.000000e+00> : vector<1xf32>
      %61 = vector.multi_reduction <add>, %60, %cst_32 [1, 2] : vector<1x32x1xf32> to vector<1xf32>
      %62 = vector.shape_cast %61 : vector<1xf32> to vector<1x1x1xf32>
      %63 = vector.extract %62[0, 0, 0] : f32 from vector<1x1x1xf32>
      %64 = vector.shape_cast %59 : vector<32x1xf32> to vector<1x32x1xf32>
      %cst_33 = arith.constant dense<0.000000e+00> : vector<1xf32>
      %65 = vector.multi_reduction <add>, %64, %cst_33 [1, 2] : vector<1x32x1xf32> to vector<1xf32>
      %66 = vector.shape_cast %65 : vector<1xf32> to vector<1x1x1xf32>
      %67 = vector.extract %66[0, 0, 0] : f32 from vector<1x1x1xf32>
      %c0_i32_34 = arith.constant 0 : i32
      %68 = arith.cmpi eq, %arg1, %c0_i32_34 : i32
      %69 = arith.extui %68 : i1 to i32
      %c0_i32_35 = arith.constant 0 : i32
      %70 = arith.cmpi ne, %69, %c0_i32_35 : i32
      scf.if %70 {
        %cst_40 = arith.constant 0.000000e+00 : f32
        %84 = arith.index_cast %arg0 : i32 to index
        %c0_41 = arith.constant 0 : index
        %85 = memref.load %arg7[%84, %c0_41] : memref<2x3xf32, #tpu.memory_space<smem>>
        memref.store %cst_40, %arg7[%84, %c0_41] : memref<2x3xf32, #tpu.memory_space<smem>>
        %cst_42 = arith.constant 0.000000e+00 : f32
        %86 = arith.index_cast %arg0 : i32 to index
        %c1_43 = arith.constant 1 : index
        %87 = memref.load %arg7[%86, %c1_43] : memref<2x3xf32, #tpu.memory_space<smem>>
        memref.store %cst_42, %arg7[%86, %c1_43] : memref<2x3xf32, #tpu.memory_space<smem>>
        %cst_44 = arith.constant 0.000000e+00 : f32
        %88 = arith.index_cast %arg0 : i32 to index
        %c2_45 = arith.constant 2 : index
        %89 = memref.load %arg7[%88, %c2_45] : memref<2x3xf32, #tpu.memory_space<smem>>
        memref.store %cst_44, %arg7[%88, %c2_45] : memref<2x3xf32, #tpu.memory_space<smem>>
      } else {
      }
      %71 = arith.index_cast %arg0 : i32 to index
      %c1 = arith.constant 1 : index
      %72 = memref.load %arg7[%71, %c1] : memref<2x3xf32, #tpu.memory_space<smem>>
      %73 = arith.addf %72, %63 : f32
      %74 = arith.index_cast %arg0 : i32 to index
      %c1_36 = arith.constant 1 : index
      %75 = memref.load %arg7[%74, %c1_36] : memref<2x3xf32, #tpu.memory_space<smem>>
      memref.store %73, %arg7[%74, %c1_36] : memref<2x3xf32, #tpu.memory_space<smem>>
      %76 = arith.index_cast %arg0 : i32 to index
      %c2 = arith.constant 2 : index
      %77 = memref.load %arg7[%76, %c2] : memref<2x3xf32, #tpu.memory_space<smem>>
      %78 = arith.addf %77, %67 : f32
      %79 = arith.index_cast %arg0 : i32 to index
      %c2_37 = arith.constant 2 : index
      %80 = memref.load %arg7[%79, %c2_37] : memref<2x3xf32, #tpu.memory_space<smem>>
      memref.store %78, %arg7[%79, %c2_37] : memref<2x3xf32, #tpu.memory_space<smem>>
      %c0_i32_38 = arith.constant 0 : i32
      %81 = arith.cmpi eq, %arg1, %c0_i32_38 : i32
      %82 = arith.extui %81 : i1 to i32
      %c0_i32_39 = arith.constant 0 : i32
      %83 = arith.cmpi ne, %82, %c0_i32_39 : i32
      scf.if %83 {
        %84 = arith.index_cast %arg0 : i32 to index
        %c1_40 = arith.constant 1 : index
        %85 = memref.load %arg7[%84, %c1_40] : memref<2x3xf32, #tpu.memory_space<smem>>
        %cst_41 = arith.constant 3.125000e-02 : f32
        %86 = arith.mulf %85, %cst_41 : f32
        %87 = arith.index_cast %arg0 : i32 to index
        %c2_42 = arith.constant 2 : index
        %88 = memref.load %arg7[%87, %c2_42] : memref<2x3xf32, #tpu.memory_space<smem>>
        %cst_43 = arith.constant 3.125000e-02 : f32
        %89 = arith.mulf %88, %cst_43 : f32
        %90 = arith.addf %86, %89 : f32
        %91 = arith.index_cast %arg0 : i32 to index
        %c0_44 = arith.constant 0 : index
        %92 = memref.load %arg7[%91, %c0_44] : memref<2x3xf32, #tpu.memory_space<smem>>
        memref.store %90, %arg7[%91, %c0_44] : memref<2x3xf32, #tpu.memory_space<smem>>
        %93 = arith.index_cast %arg0 : i32 to index
        %c1_45 = arith.constant 1 : index
        %94 = memref.load %arg7[%93, %c1_45] : memref<2x3xf32, #tpu.memory_space<smem>>
        memref.store %86, %arg7[%93, %c1_45] : memref<2x3xf32, #tpu.memory_space<smem>>
        %95 = arith.index_cast %arg0 : i32 to index
        %c2_46 = arith.constant 2 : index
        %96 = memref.load %arg7[%95, %c2_46] : memref<2x3xf32, #tpu.memory_space<smem>>
        memref.store %89, %arg7[%95, %c2_46] : memref<2x3xf32, #tpu.memory_space<smem>>
      } else {
      }
    } else {
    }
    return
  }
  func.func @transform_0(%arg0: i32, %arg1: i32, %arg2: i32, %arg3: memref<2xf32, #tpu.memory_space<smem>>) -> (i32, i32, i32) {
    %c0_i32 = arith.constant 0 : i32
    %c0_i32_0 = arith.constant 0 : i32
    return %arg0, %arg1, %c0_i32 : i32, i32, i32
  }
  func.func @transform_1(%arg0: i32, %arg1: i32, %arg2: i32, %arg3: memref<2xf32, #tpu.memory_space<smem>>) -> (i32, i32, i32) {
    %c0_i32 = arith.constant 0 : i32
    %c0_i32_0 = arith.constant 0 : i32
    return %arg0, %arg1, %c0_i32 : i32, i32, i32
  }
  func.func @transform_2(%arg0: i32, %arg1: i32, %arg2: i32, %arg3: memref<2xf32, #tpu.memory_space<smem>>) -> (i32, i32, i32) {
    %c0_i32 = arith.constant 0 : i32
    %c0_i32_0 = arith.constant 0 : i32
    return %arg0, %arg2, %c0_i32 : i32, i32, i32
  }
  func.func @transform_3(%arg0: i32, %arg1: i32, %arg2: i32, %arg3: memref<2xf32, #tpu.memory_space<smem>>) -> (i32, i32) {
    %c0_i32 = arith.constant 0 : i32
    %c0_i32_0 = arith.constant 0 : i32
    %c0_i32_1 = arith.constant 0 : i32
    return %c0_i32, %c0_i32_0 : i32, i32
  }
}

</mosaic_0001>

<llo_original>
// kernel: tpu_custom_call.1
$region0: #{tpu_custom_call.1}
  #allocation0 [shape = 'u32[]', space=smem, size = 0x4, offset = 0x4, fixed_abs, tag = 'smem constant byte address 0x4 - core index']
  #allocation1 [shape = 'u32[144,128]{1,0:T(1,128)}', space=vmem, size = 0x12000, scoped, tag = 'internal scratch']
  #allocation2 [shape = 'f32[32,1]{1,0:T(8,128)}', space=vmem, size = 0x4000, scoped, tag = 'scratch operand']
  #allocation3 [shape = 'f32[32,1]{1,0:T(8,128)}', space=vmem, size = 0x4000, scoped, tag = 'scratch operand']
  #allocation4 [shape = 's32[1]{0}', space=sflag, size = 0x4, scoped, tag = 'scoped memory for tpu_custom_call.1']
  #allocation5 [shape = 'u8[512]{0}', space=smem, size = 0x200, scoped, tag = 'prefetched SMEM operand 0']
  %s0 = inlined_call_operand.vmem [shape: f32[2], index: 0, kind: input, shape index: {}]
  %s1 = inlined_call_operand.vmem [shape: f32[2,32,10], index: 1, kind: input, shape index: {}]
  %s2 = inlined_call_operand.vmem [shape: f32[2,32,10], index: 2, kind: input, shape index: {}]
  %s3 = inlined_call_operand.vmem [shape: f32[2,32,10], index: 3, kind: input, shape index: {}]
  %s4 = inlined_call_operand.hbm [shape: f32[2,3], index: 4, kind: output, shape index: {}]
  %s5 = sld [smem:[#allocation0]]
  $region61: #{tpu_custom_call.1} parent=0
    _
  %s7 = ssub.s32 1, %s5
  %s8 = scalar_select 0, %s7, %s5
  %s9 = sshll.u32 %s0, 4
  %s10 = int_to_ptr.vmem [resolvable:$true] %s9
  %12 = dma.vmem_to_smem %s10, 16, [#allocation5], [#allocation4]
  %13 = dma.done [#allocation4], 16
  %14 = sfence
  $region1: #{tpu_custom_call.1} parent=0
    #allocation6 [shape = 'u8[1024]{0}', space=smem, size = 0x400, scoped, tag = 'output window, operand 0, single buffered']
    #allocation7 [shape = 's32[2]{0}', space=sflag, size = 0x8, scoped, tag = 'scoped memory for tpu_custom_call.1']
    %15 = vsyncpa [#allocation7], 0
    loop: start=0, step=1, limit=4
    $region2: #{tpu_custom_call.1} parent=1 // loop_pre_header
      _
    $region3: #{tpu_custom_call.1} parent=1 // loop_header
      %s17 = sphi 0, %s21
      %p18 = scmp.ge.s32.totalorder %s17, 4
      %s24 = sphi 0, %s43
      %s25 = sphi 0, %s39
      %s26 = sphi 0, %s35
      %s27 = sphi 0, %s24
      %s28 = sphi 0, %s25
      %s29 = sphi 0, %s26
      %s30 = sphi 0, %s27
      %s31 = sphi 0, %s28
      %s32 = sphi 0, %s29
      %s48 = sphi 0, %s50
      %s51 = sphi 0, %s48
      %s52 = sphi 0, %s51
      %s68 = sphi 0, %s52
      %s76 = sphi 0, %s78
      %s79 = sphi 0, %s76
      %s80 = sphi 0, %s79
      %s96 = sphi 0, %s80
      %s104 = sphi 0, %s106
      %s107 = sphi 0, %s104
      %s108 = sphi 0, %s107
      %s124 = sphi 0, %s108
      %s128 = sphi 0, %s128
      %s130 = sphi 0, %s128
      %s131 = sphi 0, %s130
      %s145 = sphi 0, %s131
    $region4: #{tpu_custom_call.1} parent=1 // loop_header_branch
      %20 = sbr.rel (%p18) target = $region8
    $region5: #{tpu_custom_call.1} parent=1 // loop_body
      %s22 = ssub.s32 %s17, 1
      %s23 = ssub.s32 %s17, 2
      %s33 = sadd.s32 1, %s26
      %p34 = scmp.ge.s32.totalorder %s33, 1
      %s35 = scalar_select %p34, 0, %s33
      %s36 = sadd.s32 1, %s25
      %s37 = scalar_select %p34, %s36, %s25
      %p38 = scmp.ge.s32.totalorder %s37, 1
      %s39 = scalar_select %p38, 0, %s37
      %s40 = sadd.s32 1, %s24
      %s41 = scalar_select %p38, %s40, %s24
      %p42 = scmp.ge.s32.totalorder %s41, 2
      %s43 = scalar_select %p42, 0, %s41
      %s44 = ssub.s32 %s24, %s43
      %s45 = ssub.s32 %s25, %s39
      %s46 = sor.u32 %s44, %s45
      %p47 = scmp.eq.s32.totalorder %s46, 0
      %s49 = sadd.s32 %s48, 1
      %s50 = scalar_select %p47, %s48, %s49
      %p53 = pneg %p47
      %p54 = scmp.eq.s32.totalorder %s17, 1
      %p55 = por %p53, %p54
      %p56 = scmp.ne.s32.totalorder %s48, %s51
      %p57 = scmp.eq.s32.totalorder %s17, 0
      %p58 = por %p56, %p57
      %p59 = scmp.ne.s32.totalorder %s48, %s51
      %p60 = scmp.eq.s32.totalorder %s22, 1
      %p61 = por %p59, %p60
      %p62 = scmp.ne.s32.totalorder %s51, %s52
      %p63 = scmp.eq.s32.totalorder %s22, 0
      %p64 = por %p62, %p63
      %p65 = scmp.ne.s32.totalorder %s51, %s52
      %p66 = scmp.eq.s32.totalorder %s23, 1
      %p67 = por %p65, %p66
      %p69 = scmp.ne.s32.totalorder %s52, %s68
      %p70 = scmp.eq.s32.totalorder %s23, 0
      %p71 = por %p69, %p70
      %s72 = ssub.s32 %s24, %s43
      %s73 = ssub.s32 %s25, %s39
      %s74 = sor.u32 %s72, %s73
      %p75 = scmp.eq.s32.totalorder %s74, 0
      %s77 = sadd.s32 %s76, 1
      %s78 = scalar_select %p75, %s76, %s77
      %p81 = pneg %p75
      %p82 = scmp.eq.s32.totalorder %s17, 1
      %p83 = por %p81, %p82
      %p84 = scmp.ne.s32.totalorder %s76, %s79
      %p85 = scmp.eq.s32.totalorder %s17, 0
      %p86 = por %p84, %p85
      %p87 = scmp.ne.s32.totalorder %s76, %s79
      %p88 = scmp.eq.s32.totalorder %s22, 1
      %p89 = por %p87, %p88
      %p90 = scmp.ne.s32.totalorder %s79, %s80
      %p91 = scmp.eq.s32.totalorder %s22, 0
      %p92 = por %p90, %p91
      %p93 = scmp.ne.s32.totalorder %s79, %s80
      %p94 = scmp.eq.s32.totalorder %s23, 1
      %p95 = por %p93, %p94
      %p97 = scmp.ne.s32.totalorder %s80, %s96
      %p98 = scmp.eq.s32.totalorder %s23, 0
      %p99 = por %p97, %p98
      %s100 = ssub.s32 %s24, %s43
      %s101 = ssub.s32 %s26, %s35
      %s102 = sor.u32 %s100, %s101
      %p103 = scmp.eq.s32.totalorder %s102, 0
      %s105 = sadd.s32 %s104, 1
      %s106 = scalar_select %p103, %s104, %s105
      %p109 = pneg %p103
      %p110 = scmp.eq.s32.totalorder %s17, 1
      %p111 = por %p109, %p110
      %p112 = scmp.ne.s32.totalorder %s104, %s107
      %p113 = scmp.eq.s32.totalorder %s17, 0
      %p114 = por %p112, %p113
      %p115 = scmp.ne.s32.totalorder %s104, %s107
      %p116 = scmp.eq.s32.totalorder %s22, 1
      %p117 = por %p115, %p116
      %p118 = scmp.ne.s32.totalorder %s107, %s108
      %p119 = scmp.eq.s32.totalorder %s22, 0
      %p120 = por %p118, %p119
      %p121 = scmp.ne.s32.totalorder %s107, %s108
      %p122 = scmp.eq.s32.totalorder %s23, 1
      %p123 = por %p121, %p122
      %p125 = scmp.ne.s32.totalorder %s108, %s124
      %p126 = scmp.eq.s32.totalorder %s23, 0
      %p127 = por %p125, %p126
      %s129 = sadd.s32 %s128, 1
      %p132 = scmp.eq.s32.totalorder %s17, 1
      %p133 = scmp.ne.s32.totalorder %s128, %s130
      %p134 = scmp.eq.s32.totalorder %s17, 0
      %p135 = por %p133, %p134
      %p136 = scmp.ne.s32.totalorder %s128, %s130
      %p137 = scmp.eq.s32.totalorder %s22, 1
      %p138 = por %p136, %p137
      %p139 = scmp.ne.s32.totalorder %s130, %s131
      %p140 = scmp.eq.s32.totalorder %s22, 0
      %p141 = por %p139, %p140
      %p142 = scmp.ne.s32.totalorder %s130, %s131
      %p143 = scmp.eq.s32.totalorder %s23, 1
      %p144 = por %p142, %p143
      %p146 = scmp.ne.s32.totalorder %s131, %s145
      %p147 = scmp.eq.s32.totalorder %s23, 0
      %p148 = por %p146, %p147
      %p149 = scmp.le.s32.totalorder 1, %s17
      %p150 = scmp.lt.s32.totalorder %s17, 3
      %p151 = pnand %p149, %p150
      %p152 = pneg %p151
      // Predicated region
      $region9: #{tpu_custom_call.1} parent=5 // pred_check
        _
      $region10: #{tpu_custom_call.1} parent=5 // pred_check_branch
        %154 = sbr.rel (%p151) target = $region12
      $region11: #{tpu_custom_call.1} parent=5 // pred_region
        %s155 = ssub.s32 %s17, 1
      $region12: #{tpu_custom_call.1} parent=5 // pred_fallthru
        _
      %p156 = scmp.lt.s32.totalorder %s17, 2
      // Predicated region
      $region13: #{tpu_custom_call.1} parent=5 // pred_check
        %p157 = pneg %p156
      $region14: #{tpu_custom_call.1} parent=5 // pred_check_branch
        %159 = sbr.rel (%p157) target = $region16
      $region15: #{tpu_custom_call.1} parent=5 // pred_region
        // Predicated region
        $region17: #{tpu_custom_call.1} parent=15 // pred_check
          %p160 = pneg %p58
        $region18: #{tpu_custom_call.1} parent=15 // pred_check_branch
          %162 = sbr.rel (%p160) target = $region20
        $region19: #{tpu_custom_call.1} parent=15 // pred_region
          %s163 = smul.u32 4, %s25
          %p164 = scmp.lt.s32.totalorder %s24, 1
          %s165 = scalar_select %p164, %s24, 1
          %p166 = scmp.lt.s32.totalorder %s163, 3
          %s167 = scalar_select %p166, %s163, 3
          %s168 = smul.addr %s165, 4
          %s169 = sadd.s32 %s167, %s168
          %s170 = smul.addr %s169, 8
          %s171 = scalar_lea.vmem %s1, %s170
          %s172 = smul.u32 4, %s25
        $region20: #{tpu_custom_call.1} parent=15 // pred_fallthru
          _
        // Predicated region
        $region21: #{tpu_custom_call.1} parent=15 // pred_check
          %p173 = pneg %p86
        $region22: #{tpu_custom_call.1} parent=15 // pred_check_branch
          %175 = sbr.rel (%p173) target = $region24
        $region23: #{tpu_custom_call.1} parent=15 // pred_region
          %s176 = smul.u32 4, %s25
          %p177 = scmp.lt.s32.totalorder %s24, 1
          %s178 = scalar_select %p177, %s24, 1
          %p179 = scmp.lt.s32.totalorder %s176, 3
          %s180 = scalar_select %p179, %s176, 3
          %s181 = smul.addr %s178, 4
          %s182 = sadd.s32 %s180, %s181
          %s183 = smul.addr %s182, 8
          %s184 = scalar_lea.vmem %s2, %s183
          %s185 = smul.u32 4, %s25
        $region24: #{tpu_custom_call.1} parent=15 // pred_fallthru
          _
        // Predicated region
        $region25: #{tpu_custom_call.1} parent=15 // pred_check
          %p186 = pneg %p114
        $region26: #{tpu_custom_call.1} parent=15 // pred_check_branch
          %188 = sbr.rel (%p186) target = $region28
        $region27: #{tpu_custom_call.1} parent=15 // pred_region
          %s189 = smul.u32 4, %s26
          %p190 = scmp.lt.s32.totalorder %s24, 1
          %s191 = scalar_select %p190, %s24, 1
          %p192 = scmp.lt.s32.totalorder %s189, 3
          %s193 = scalar_select %p192, %s189, 3
          %s194 = smul.addr %s191, 4
          %s195 = sadd.s32 %s193, %s194
          %s196 = smul.addr %s195, 8
          %s197 = scalar_lea.vmem %s3, %s196
          %s198 = smul.u32 4, %s26
        $region28: #{tpu_custom_call.1} parent=15 // pred_fallthru
          _
      $region16: #{tpu_custom_call.1} parent=5 // pred_fallthru
        _
      %p199 = scmp.le.s32.totalorder 1, %s17
      %p200 = scmp.lt.s32.totalorder %s17, 3
      %p201 = pnand %p199, %p200
      %p202 = pneg %p201
      // Predicated region
      $region29: #{tpu_custom_call.1} parent=5 // pred_check
        _
      $region30: #{tpu_custom_call.1} parent=5 // pred_check_branch
        %204 = sbr.rel (%p201) target = $region32
      $region31: #{tpu_custom_call.1} parent=5 // pred_region
        %s205 = ssub.s32 %s17, 1
        %s206 = smul.u32 4, %s28
        %p207 = scmp.lt.s32.totalorder %s27, 1
        %s208 = scalar_select %p207, %s27, 1
        %p209 = scmp.lt.s32.totalorder %s206, 3
        %s210 = scalar_select %p209, %s206, 3
        %s211 = smul.addr %s208, 4
        %s212 = sadd.s32 %s210, %s211
        %s213 = smul.addr %s212, 8
        %s214 = scalar_lea.vmem %s1, %s213
        %p215 = pneg %p64
        %p216 = pneg %p61
        %s217 = smul.u32 4, %s28
        %p218 = scmp.lt.s32.totalorder %s27, 1
        %s219 = scalar_select %p218, %s27, 1
        %p220 = scmp.lt.s32.totalorder %s217, 3
        %s221 = scalar_select %p220, %s217, 3
        %s222 = smul.addr %s219, 4
        %s223 = sadd.s32 %s221, %s222
        %s224 = smul.addr %s223, 8
        %s225 = scalar_lea.vmem %s2, %s224
        %p226 = pneg %p92
        %p227 = pneg %p89
        %s228 = smul.u32 4, %s29
        %p229 = scmp.lt.s32.totalorder %s27, 1
        %s230 = scalar_select %p229, %s27, 1
        %p231 = scmp.lt.s32.totalorder %s228, 3
        %s232 = scalar_select %p231, %s228, 3
        %s233 = smul.addr %s230, 4
        %s234 = sadd.s32 %s232, %s233
        %s235 = smul.addr %s234, 8
        %s236 = scalar_lea.vmem %s3, %s235
        %p237 = pneg %p120
        %p238 = pneg %p117
        %p239 = pneg %p141
        %p240 = pneg %p138
        %s241 = smul.u32 4, %s28
        %p242 = scmp.lt.s32.totalorder %s27, 1
        %s243 = scalar_select %p242, %s27, 1
        %p244 = scmp.lt.s32.totalorder %s241, 3
        %s245 = scalar_select %p244, %s241, 3
        %s246 = smul.addr %s243, 4
        %s247 = sadd.s32 %s245, %s246
        %s248 = smul.addr %s247, 8
        %s249 = scalar_lea.vmem %s1, %s248
        %s250 = smul.u32 4, %s28
        %s251 = smul.u32 4, %s28
        %p252 = scmp.lt.s32.totalorder %s27, 1
        %s253 = scalar_select %p252, %s27, 1
        %p254 = scmp.lt.s32.totalorder %s251, 3
        %s255 = scalar_select %p254, %s251, 3
        %s256 = smul.addr %s253, 4
        %s257 = sadd.s32 %s255, %s256
        %s258 = smul.addr %s257, 8
        %s259 = scalar_lea.vmem %s2, %s258
        %s260 = smul.u32 4, %s28
        %s261 = smul.u32 4, %s29
        %p262 = scmp.lt.s32.totalorder %s27, 1
        %s263 = scalar_select %p262, %s27, 1
        %p264 = scmp.lt.s32.totalorder %s261, 3
        %s265 = scalar_select %p264, %s261, 3
        %s266 = smul.addr %s263, 4
        %s267 = sadd.s32 %s265, %s266
        %s268 = smul.addr %s267, 8
        %s269 = scalar_lea.vmem %s3, %s268
        %s270 = smul.u32 4, %s29
        %p271 = scmp.eq.s32.totalorder %s29, 0
        // Predicated region
        $region33: #{tpu_custom_call.1} parent=31 // pred_check
          %p272 = pneg %p271
        $region34: #{tpu_custom_call.1} parent=31 // pred_check_branch
          %274 = sbr.rel (%p272) target = $region36
        $region35: #{tpu_custom_call.1} parent=31 // pred_region
          %vm275 = vcmask 7168
          %276 = vst.msk [vmem:[#allocation2] sm:$0xff] %vm275, -inf
          %277 = vst.msk [vmem:[#allocation2 + $0x8] sm:$0xff] %vm275, -inf
          %278 = vst.msk [vmem:[#allocation2 + $0x10] sm:$0xff] %vm275, -inf
          %279 = vst.msk [vmem:[#allocation2 + $0x18] sm:$0xff] %vm275, -inf
          %280 = vst.msk [vmem:[#allocation3] sm:$0xff] %vm275, 0.0
          %281 = vst.msk [vmem:[#allocation3 + $0x8] sm:$0xff] %vm275, 0.0
          %282 = vst.msk [vmem:[#allocation3 + $0x10] sm:$0xff] %vm275, 0.0
          %283 = vst.msk [vmem:[#allocation3 + $0x18] sm:$0xff] %vm275, 0.0
        $region36: #{tpu_custom_call.1} parent=31 // pred_fallthru
          _
        %s284 = sld [smem:[#allocation5 + %s27]]
        %v285 = vld [vmem:[%s249] sm:$0xff]
        %v286 = vld [vmem:[%s249 + $0x8] sm:$0xff]
        %v287 = vld [vmem:[%s249 + $0x10] sm:$0xff]
        %v288 = vld [vmem:[%s249 + $0x18] sm:$0xff]
        %v289 = vld [vmem:[%s269] sm:$0xff]
        %v290 = vld [vmem:[%s269 + $0x8] sm:$0xff]
        %v291 = vld [vmem:[%s269 + $0x10] sm:$0xff]
        %v292 = vld [vmem:[%s269 + $0x18] sm:$0xff]
        %vm293 = vcmask 80896
        %v295 = vsel %vm293, %v285, 0
        %v298 = vsel %vm293, %v286, 0
        %v301 = vsel %vm293, %v287, 0
        %v304 = vsel %vm293, %v288, 0
        %v307 = vsel %vm293, %v289, 0
        %v310 = vsel %vm293, %v290, 0
        %v313 = vsel %vm293, %v291, 0
        %v316 = vsel %vm293, %v292, 0
        %318 = vmatprep.subr.mxu0 0.0
        %319 = vmatpush1.xpose.msra.mxu0 %v307
        %320 = vmatprep.subr.mxu0 0.0
        %321 = vmatpush1.xpose.msra.mxu0 %v310
        %322 = vmatprep.subr.mxu0 0.0
        %323 = vmatpush1.xpose.msra.mxu0 %v313
        %324 = vmatprep.subr.mxu0 0.0
        %325 = vmatpush1.xpose.msra.mxu0 %v316
        %326 = vmatprep.subr.mxu0 0.0
        %327 = vmatpush1.xpose.msra.mxu0 0.0
        %328 = vmatprep.subr.mxu0 0.0
        %329 = vmatpush1.xpose.msra.mxu0 0.0
        %330 = vmatprep.subr.mxu0 0.0
        %331 = vmatpush1.xpose.msra.mxu0 0.0
        %332 = vmatprep.subr.mxu0 0.0
        %333 = vmatpush1.xpose.msra.mxu0 0.0
        %334 = vmatprep.subr.mxu0 0.0
        %335 = vmatpush1.xpose.msra.mxu0 0.0
        %336 = vmatprep.subr.mxu0 0.0
        %337 = vmatpush1.xpose.msra.mxu0 0.0
        %338 = vmatprep.subr.mxu0 0.0
        %339 = vmatpush1.xpose.msra.mxu0 0.0
        %340 = vmatprep.subr.mxu0 0.0
        %341 = vmatpush1.xpose.msra.mxu0 0.0
        %342 = vmatprep.subr.mxu0 0.0
        %343 = vmatpush1.xpose.msra.mxu0 0.0
        %344 = vmatprep.subr.mxu0 0.0
        %345 = vmatpush1.xpose.msra.mxu0 0.0
        %346 = vmatprep.subr.mxu0 0.0
        %347 = vmatpush1.xpose.msra.mxu0 0.0
        %348 = vmatprep.subr.mxu0 0.0
        %349 = vmatpush1.xpose.msra.mxu0 0.0
        %350 = vmatprep.subr.mxu0 0.0
        %351 = vmatpush1.xpose.msra.mxu0 0.0
        %352 = vmatprep.subr.mxu0 0.0
        %353 = vmatpush1.xpose.msra.mxu0 0.0
        %354 = vmatprep.subr.mxu0 0.0
        %355 = vmatpush1.xpose.msra.mxu0 0.0
        %356 = vmatprep.subr.mxu0 0.0
        %357 = vmatpush1.xpose.msra.mxu0 0.0
        %358 = vmatprep.subr.mxu0 0.0
        %359 = vmatpush1.xpose.msra.mxu0 0.0
        %360 = vmatprep.subr.mxu0 0.0
        %361 = vmatpush1.xpose.msra.mxu0 0.0
        %362 = vmatprep.subr.mxu0 0.0
        %363 = vmatpush1.xpose.msra.mxu0 0.0
        %364 = vmatprep.subr.mxu0 0.0
        %365 = vmatpush1.xpose.msra.mxu0 0.0
        %366 = vmatprep.subr.mxu0 0.0
        %367 = vmatpush1.xpose.msra.mxu0 0.0
        %368 = vmatprep.subr.mxu0 0.0
        %369 = vmatpush1.xpose.msra.mxu0 0.0
        %370 = vmatprep.subr.mxu0 0.0
        %371 = vmatpush1.xpose.msra.mxu0 0.0
        %372 = vmatprep.subr.mxu0 0.0
        %373 = vmatpush1.xpose.msra.mxu0 0.0
        %374 = vmatprep.subr.mxu0 0.0
        %375 = vmatpush1.xpose.msra.mxu0 0.0
        %376 = vmatprep.subr.mxu0 0.0
        %377 = vmatpush1.xpose.msra.mxu0 0.0
        %378 = vmatprep.subr.mxu0 0.0
        %379 = vmatpush1.xpose.msra.mxu0 0.0
        %380 = vmatprep.subr.mxu0 0.0
        %381 = vmatpush1.xpose.msra.mxu0 0.0
        %382 = vmatprep.mubr.f32.mxu0 0.0
        %383 = vmatmul.mubr.f32.gmra.mrb[0].mxu0 %v295
        %v384 = vpop.f32.mrb[0].mxu0
        %v385 = vadd.f32 0.0, %v384
        %v386 = vpop.f32.mrb[0].mxu0
        %387 = vmatprep.mubr.f32.mxu0 0.0
        %388 = vmatmul.mubr.f32.gmra.mrb[0].mxu0 %v298
        %v389 = vpop.f32.mrb[0].mxu0
        %v390 = vadd.f32 0.0, %v389
        %v391 = vpop.f32.mrb[0].mxu0
        %392 = vmatprep.mubr.f32.mxu0 0.0
        %393 = vmatmul.mubr.f32.gmra.mrb[0].mxu0 %v301
        %v394 = vpop.f32.mrb[0].mxu0
        %v395 = vadd.f32 0.0, %v394
        %v396 = vpop.f32.mrb[0].mxu0
        %397 = vmatprep.mubr.f32.mxu0 0.0
        %398 = vmatmul.mubr.f32.gmra.mrb[0].mxu0 %v304
        %v399 = vpop.f32.mrb[0].mxu0
        %v400 = vadd.f32 0.0, %v399
        %v401 = vpop.f32.mrb[0].mxu0
        %402 = vdwg.mxu0
        %v403 = vstv %s284
        %v404 = vmul.f32 %v385, %v403
        %v405 = vmul.f32 %v390, %v403
        %v406 = vmul.f32 %v395, %v403
        %v407 = vmul.f32 %v400, %v403
        %v408 = vlaneseq
        %v409 = vand.u32 %v408, 127
        %s410 = smul.u32 %s29, 32
        %v411 = vstv %s410
        %v412 = vadd.s32 %v409, %v411
        %vm413 = vcmp.lt.s32.totalorder %v412, 32
        %v414 = vsel %vm413, %v404, -inf
        %v415 = vsel %vm413, %v405, -inf
        %v416 = vsel %vm413, %v406, -inf
        %v417 = vsel %vm413, %v407, -inf
        %v418 = vld [vmem:[#allocation2] sm:$0xff]
        %v419 = vld [vmem:[#allocation2 + $0x8] sm:$0xff]
        %v420 = vld [vmem:[#allocation2 + $0x10] sm:$0xff]
        %v421 = vld [vmem:[#allocation2 + $0x18] sm:$0xff]
        %vm422 = vcmask 261120
        %v423 = vsel %vm422, %v414, -inf
        %424 = vmax.xlane.f32.xlu0 %v423
        %v425 = vpop.xlane.xlu0 %424
        %v426 = vsel %vm422, %v415, -inf
        %427 = vmax.xlane.f32.xlu0 %v426
        %v428 = vpop.xlane.xlu0 %427
        %v429 = vsel %vm422, %v416, -inf
        %430 = vmax.xlane.f32.xlu0 %v429
        %v431 = vpop.xlane.xlu0 %430
        %v432 = vsel %vm422, %v417, -inf
        %433 = vmax.xlane.f32.xlu0 %v432
        %v434 = vpop.xlane.xlu0 %433
        %v435 = vmax.f32 %v418, %v425
        %v436 = vmax.f32 %v419, %v428
        %v437 = vmax.f32 %v420, %v431
        %v438 = vmax.f32 %v421, %v434
        %v439 = vsub.f32 %v418, %v435
        %v440 = vsub.f32 %v419, %v436
        %v441 = vsub.f32 %v420, %v437
        %v442 = vsub.f32 %v421, %v438
        %v443 = vmul.f32 %v439, 1.442695
        %v444 = vpow.pop %v443
        %v445 = vmul.f32 %v440, 1.442695
        %v446 = vpow.pop %v445
        %v447 = vmul.f32 %v441, 1.442695
        %v448 = vpow.pop %v447
        %v449 = vmul.f32 %v442, 1.442695
        %v450 = vpow.pop %v449
        %v451 = vld [vmem:[#allocation3] sm:$0xff]
        %v452 = vld [vmem:[#allocation3 + $0x8] sm:$0xff]
        %v453 = vld [vmem:[#allocation3 + $0x10] sm:$0xff]
        %v454 = vld [vmem:[#allocation3 + $0x18] sm:$0xff]
        %v455 = vmul.f32 %v444, %v451
        %v456 = vmul.f32 %v446, %v452
        %v457 = vmul.f32 %v448, %v453
        %v458 = vmul.f32 %v450, %v454
        %460 = vset.pattern.permute.xlu0 0
        %461 = vperm.xlu0 %460, %v435
        %v462 = vpop.permute.xlu0 %461
        %465 = vset.pattern.permute.xlu0 0
        %466 = vperm.xlu0 %465, %v436
        %v467 = vpop.permute.xlu0 %466
        %470 = vset.pattern.permute.xlu0 0
        %471 = vperm.xlu0 %470, %v437
        %v472 = vpop.permute.xlu0 %471
        %475 = vset.pattern.permute.xlu0 0
        %476 = vperm.xlu0 %475, %v438
        %v477 = vpop.permute.xlu0 %476
        %v479 = vsub.f32 %v414, %v462
        %v480 = vsub.f32 %v415, %v467
        %v481 = vsub.f32 %v416, %v472
        %v482 = vsub.f32 %v417, %v477
        %v483 = vmul.f32 %v479, 1.442695
        %v484 = vpow.pop %v483
        %v485 = vmul.f32 %v480, 1.442695
        %v486 = vpow.pop %v485
        %v487 = vmul.f32 %v481, 1.442695
        %v488 = vpow.pop %v487
        %v489 = vmul.f32 %v482, 1.442695
        %v490 = vpow.pop %v489
        %v491 = vsel %vm422, %v484, 0.0
        %492 = vadd.xlane.f32.xlu0 %v491
        %v493 = vpop.xlane.xlu0 %492
        %v494 = vsel %vm422, %v486, 0.0
        %495 = vadd.xlane.f32.xlu0 %v494
        %v496 = vpop.xlane.xlu0 %495
        %v497 = vsel %vm422, %v488, 0.0
        %498 = vadd.xlane.f32.xlu0 %v497
        %v499 = vpop.xlane.xlu0 %498
        %v500 = vsel %vm422, %v490, 0.0
        %501 = vadd.xlane.f32.xlu0 %v500
        %v502 = vpop.xlane.xlu0 %501
        %v503 = vadd.f32 %v455, %v493
        %v504 = vadd.f32 %v456, %v496
        %v505 = vadd.f32 %v457, %v499
        %v506 = vadd.f32 %v458, %v502
        %vm507 = vcmask 7168
        %508 = vst.msk [vmem:[#allocation3] sm:$0xff] %vm507, %v503
        %509 = vst.msk [vmem:[#allocation3 + $0x8] sm:$0xff] %vm507, %v504
        %510 = vst.msk [vmem:[#allocation3 + $0x10] sm:$0xff] %vm507, %v505
        %511 = vst.msk [vmem:[#allocation3 + $0x18] sm:$0xff] %vm507, %v506
        %512 = vst.msk [vmem:[#allocation2] sm:$0xff] %vm507, %v435
        %513 = vst.msk [vmem:[#allocation2 + $0x8] sm:$0xff] %vm507, %v436
        %514 = vst.msk [vmem:[#allocation2 + $0x10] sm:$0xff] %vm507, %v437
        %515 = vst.msk [vmem:[#allocation2 + $0x18] sm:$0xff] %vm507, %v438
        // Predicated region
        $region37: #{tpu_custom_call.1} parent=31 // pred_check
          %p516 = pneg %p271
        $region38: #{tpu_custom_call.1} parent=31 // pred_check_branch
          %518 = sbr.rel (%p516) target = $region40
        $region39: #{tpu_custom_call.1} parent=31 // pred_region
          %v519 = vld [vmem:[%s259] sm:$0xff]
          %v520 = vld [vmem:[%s259 + $0x8] sm:$0xff]
          %v521 = vld [vmem:[%s259 + $0x10] sm:$0xff]
          %v522 = vld [vmem:[%s259 + $0x18] sm:$0xff]
          %v523 = vmul.f32 %v285, %v519
          %v524 = vmul.f32 %v286, %v520
          %v525 = vmul.f32 %v287, %v521
          %v526 = vmul.f32 %v288, %v522
          %v527 = vsel %vm293, %v523, 0.0
          %528 = vadd.xlane.f32.xlu0 %v527
          %v529 = vpop.xlane.xlu0 %528
          %v530 = vsel %vm293, %v524, 0.0
          %531 = vadd.xlane.f32.xlu0 %v530
          %v532 = vpop.xlane.xlu0 %531
          %v533 = vsel %vm293, %v525, 0.0
          %534 = vadd.xlane.f32.xlu0 %v533
          %v535 = vpop.xlane.xlu0 %534
          %v536 = vsel %vm293, %v526, 0.0
          %537 = vadd.xlane.f32.xlu0 %v536
          %v538 = vpop.xlane.xlu0 %537
          %v539 = vmul.f32 %v529, %v403
          %v540 = vmul.f32 %v532, %v403
          %v541 = vmul.f32 %v535, %v403
          %v542 = vmul.f32 %v538, %v403
          %v543 = vlaneseq
          %v544 = vshrl.u32 %v543, 7
          %v545 = vadd.s32 %v544, 8
          %v546 = vadd.s32 %v544, 16
          %v547 = vadd.s32 %v544, 24
          %s548 = smul.u32 %s28, 32
          %v549 = vstv %s548
          %v550 = vadd.s32 %v544, %v549
          %v551 = vadd.s32 %v545, %v549
          %v552 = vadd.s32 %v546, %v549
          %v553 = vadd.s32 %v547, %v549
          %vm554 = vcmp.lt.s32.totalorder %v550, 32
          %vm555 = vcmp.lt.s32.totalorder %v551, 32
          %vm556 = vcmp.lt.s32.totalorder %v552, 32
          %vm557 = vcmp.lt.s32.totalorder %v553, 32
          %v558 = vld [vmem:[#allocation2] sm:$0xff]
          %v559 = vld [vmem:[#allocation2 + $0x8] sm:$0xff]
          %v560 = vld [vmem:[#allocation2 + $0x10] sm:$0xff]
          %v561 = vld [vmem:[#allocation2 + $0x18] sm:$0xff]
          %v562 = vsub.f32 %v558, %v539
          %v563 = vsub.f32 %v559, %v540
          %v564 = vsub.f32 %v560, %v541
          %v565 = vsub.f32 %v561, %v542
          %v566 = vsel %vm554, %v562, 0.0
          %v567 = vsel %vm555, %v563, 0.0
          %v568 = vsel %vm556, %v564, 0.0
          %v569 = vsel %vm557, %v565, 0.0
          %v570 = vld [vmem:[#allocation3] sm:$0xff]
          %v571 = vld [vmem:[#allocation3 + $0x8] sm:$0xff]
          %v572 = vld [vmem:[#allocation3 + $0x10] sm:$0xff]
          %v573 = vld [vmem:[#allocation3 + $0x18] sm:$0xff]
          %v574 = vlog2.pop %v570
          %v575 = vmul.f32 %v574, 0.6931472
          %v576 = vlog2.pop %v571
          %v577 = vmul.f32 %v576, 0.6931472
          %v578 = vlog2.pop %v572
          %v579 = vmul.f32 %v578, 0.6931472
          %v580 = vlog2.pop %v573
          %v581 = vmul.f32 %v580, 0.6931472
          %v582 = vsel %vm554, %v575, 0.0
          %v583 = vsel %vm555, %v577, 0.0
          %v584 = vsel %vm556, %v579, 0.0
          %v585 = vsel %vm557, %v581, 0.0
          %v586 = vsel %vm507, %v566, 0.0
          %v587 = vsel %vm507, %v567, 0.0
          %v588 = vadd.f32 %v586, %v587
          %v589 = vsel %vm507, %v568, 0.0
          %v590 = vadd.f32 %v588, %v589
          %v591 = vsel %vm507, %v569, 0.0
          %v592 = vadd.f32 %v590, %v591
          %593 = vadd.xlane.f32.xlu0 %v592
          %v594 = vpop.xlane.xlu0 %593
          %v595 = vrot.slane %v594, 4
          %v596 = vadd.f32 %v594, %v595
          %v597 = vrot.slane %v596, 2
          %v598 = vadd.f32 %v596, %v597
          %v599 = vrot.slane %v598, 1
          %v600 = vadd.f32 %v598, %v599
          %s601 = vtos %v600
          %v602 = vsel %vm507, %v582, 0.0
          %v603 = vsel %vm507, %v583, 0.0
          %v604 = vadd.f32 %v602, %v603
          %v605 = vsel %vm507, %v584, 0.0
          %v606 = vadd.f32 %v604, %v605
          %v607 = vsel %vm507, %v585, 0.0
          %v608 = vadd.f32 %v606, %v607
          %609 = vadd.xlane.f32.xlu0 %v608
          %v610 = vpop.xlane.xlu0 %609
          %v611 = vrot.slane %v610, 4
          %v612 = vadd.f32 %v610, %v611
          %v613 = vrot.slane %v612, 2
          %v614 = vadd.f32 %v612, %v613
          %v615 = vrot.slane %v614, 1
          %v616 = vadd.f32 %v614, %v615
          %s617 = vtos %v616
          %p618 = scmp.eq.s32.totalorder %s28, 0
          // Predicated region
          $region41: #{tpu_custom_call.1} parent=39 // pred_check
            %p619 = pneg %p618
          $region42: #{tpu_custom_call.1} parent=39 // pred_check_branch
            %621 = sbr.rel (%p619) target = $region44
          $region43: #{tpu_custom_call.1} parent=39 // pred_region
            %s622 = smul.u32 %s27, 128
            %s623 = scalar_lea.smem [#allocation6], %s622
            %624 = sst [smem:[%s623]] 0.0
            %s625 = sadd.s32 %s622, 1
            %s626 = scalar_lea.smem [#allocation6], %s625
            %627 = sst [smem:[%s626]] 0.0
            %s628 = sadd.s32 %s622, 2
            %s629 = scalar_lea.smem [#allocation6], %s628
            %630 = sst [smem:[%s629]] 0.0
          $region44: #{tpu_custom_call.1} parent=39 // pred_fallthru
            _
          %s631 = smul.u32 %s27, 128
          %s632 = sadd.s32 %s631, 1
          %s633 = sld [smem:[#allocation6 + %s632]]
          %s634 = sadd.f32 %s633, %s601
          %s635 = scalar_lea.smem [#allocation6], %s632
          %636 = sst [smem:[%s635]] %s634
          %s637 = sadd.s32 %s631, 2
          %s638 = sld [smem:[#allocation6 + %s637]]
          %s639 = sadd.f32 %s638, %s617
          %s640 = scalar_lea.smem [#allocation6], %s637
          %641 = sst [smem:[%s640]] %s639
          // Predicated region
          $region45: #{tpu_custom_call.1} parent=39 // pred_check
            %p642 = pneg %p618
          $region46: #{tpu_custom_call.1} parent=39 // pred_check_branch
            %644 = sbr.rel (%p642) target = $region48
          $region47: #{tpu_custom_call.1} parent=39 // pred_region
            %s645 = sld [smem:[#allocation6 + %s632]]
            %s646 = smul.f32 %s645, 0.03125
            %s647 = sld [smem:[#allocation6 + %s637]]
            %s648 = smul.f32 %s647, 0.03125
            %s649 = sadd.f32 %s646, %s648
            %s650 = scalar_lea.smem [#allocation6], %s631
            %651 = sst [smem:[%s650]] %s649
            %652 = sst [smem:[%s635]] %s646
            %653 = sst [smem:[%s640]] %s648
          $region48: #{tpu_custom_call.1} parent=39 // pred_fallthru
            _
        $region40: #{tpu_custom_call.1} parent=31 // pred_fallthru
          _
        // Predicated region
        $region49: #{tpu_custom_call.1} parent=31 // pred_check
          %p654 = pneg %p138
        $region50: #{tpu_custom_call.1} parent=31 // pred_check_branch
          %656 = sbr.rel (%p654) target = $region52
        $region51: #{tpu_custom_call.1} parent=31 // pred_region
          %s658 = ssub.s32 32, 32
          %659 = vsyncadd [#allocation7], %s658
          %662 = dma.smem_to_hbm [#allocation6], 32, %s4, [#allocation7]
        $region52: #{tpu_custom_call.1} parent=31 // pred_fallthru
          _
        // Predicated region
        $region53: #{tpu_custom_call.1} parent=31 // pred_check
          %p663 = pneg %p138
        $region54: #{tpu_custom_call.1} parent=31 // pred_check_branch
          %665 = sbr.rel (%p663) target = $region56
        $region55: #{tpu_custom_call.1} parent=31 // pred_region
          %666 = dma.done [#allocation7], 32
        $region56: #{tpu_custom_call.1} parent=31 // pred_fallthru
          _
        %667 = sfence
      $region32: #{tpu_custom_call.1} parent=5 // pred_fallthru
        _
      %p668 = scmp.le.s32.totalorder 2, %s17
      // Predicated region
      $region57: #{tpu_custom_call.1} parent=5 // pred_check
        %p669 = pneg %p668
      $region58: #{tpu_custom_call.1} parent=5 // pred_check_branch
        %671 = sbr.rel (%p669) target = $region60
      $region59: #{tpu_custom_call.1} parent=5 // pred_region
        %s672 = ssub.s32 %s17, 2
      $region60: #{tpu_custom_call.1} parent=5 // pred_fallthru
        _
    $region6: #{tpu_custom_call.1} parent=1 // loop_footer
      %s21 = sadd.s32 1, %s17
    $region7: #{tpu_custom_call.1} parent=1 // loop_footer_branch
      %16 = sbr.rel target = $region3
    $region8: #{tpu_custom_call.1} parent=1 // loop_exit
      _
    %673 = vsyncpa [#allocation7], 1
    %s674 = scalar_lea.sflag [#allocation7], 1
    %675 = vsyncpa %s674, 1

</llo_original>
